<compile_context>
chip_gen: v6e
topology: v6e:2x2x1
jax: 0.10.0
libtpu: 0.0.40
codegen_flags: <defaults>
</compile_context>

<pallas_src>
import jax
import jax.numpy as jnp
from jax.experimental import pallas as pl
from jax.experimental.pallas import tpu as pltpu

IN_FEATURES = 10
OUT_FEATURES = 5
MAX_TB = 2048   # batch-tile cap (multiple of 8 sublanes; tiles are tiny in VMEM)


def _round_up(n, m):
    return ((n + m - 1) // m) * m


def _pick_batch_tile(B):
    """Batch tile size.

    - B < 16: a single tile equal to the full batch dim (always a legal block,
      no divisibility requirement when the block equals the array dim).
    - otherwise: ~half the batch rounded up to 8 sublanes, capped at MAX_TB, so
      the "parallel" grid has >= 2 steps and v7x's two TensorCores both work.
    """
    if B < 16:
        return B
    half = _round_up(pl.cdiv(B, 2), 8)
    return min(MAX_TB, half)


def linear_kernel(x_ref, w_ref, b_ref, o_ref):
    # x_ref: (TB, IN)  w_ref: (IN, OUT)  b_ref: (1, OUT)  o_ref: (TB, OUT)
    acc = jnp.dot(x_ref[...], w_ref[...], preferred_element_type=jnp.float32)
    o_ref[...] = (acc + b_ref[...]).astype(o_ref.dtype)


def prepare_params(w, b):
    """PyTorch-layout weight (OUT, IN) / bias (OUT,) -> (IN, OUT) / (1, OUT).

    Done once, outside the hot path; no padding needed (the compiler pads the
    small K/N dims inside vregs for free).
    """
    return w.T, b.reshape(1, -1)


def linear_pallas(x, w_t, b_row):
    """y = x @ w_t + b_row with batch-tiled Pallas matmul; returns (B, OUT)."""
    B, in_f = x.shape
    in_f2, out_f = w_t.shape
    assert in_f == in_f2 and b_row.shape == (1, out_f)

    TB = _pick_batch_tile(B)
    grid = (pl.cdiv(B, TB),)   # last block may be partial; OOB writes discarded

    cost = pl.CostEstimate(
        flops=2 * B * in_f * out_f,
        transcendentals=0,
        bytes_accessed=4 * (B * in_f + in_f * out_f + out_f + B * out_f),
    )

    return pl.pallas_call(
        linear_kernel,
        out_shape=jax.ShapeDtypeStruct((B, out_f), x.dtype),
        grid=grid,
        in_specs=[
            pl.BlockSpec((TB, in_f), lambda i: (i, 0)),    # x: tiled over batch
            pl.BlockSpec((in_f, out_f), lambda i: (0, 0)),  # weight: resident
            pl.BlockSpec((1, out_f), lambda i: (0, 0)),     # bias: resident
        ],
        out_specs=pl.BlockSpec((TB, out_f), lambda i: (i, 0)),
        compiler_params=pltpu.CompilerParams(
            dimension_semantics=("parallel",),  # batch steps independent -> megacore
        ),
        cost_estimate=cost,
    )(x, w_t, b_row)


if __name__ == "__main__":
    key = jax.random.PRNGKey(0)
    k_x, k_w, k_b, k_x2 = jax.random.split(key, 4)

    IN, OUT = IN_FEATURES, OUT_FEATURES

    # Deterministic parameter init (mimic nn.Linear uniform(-1/sqrt(IN), 1/sqrt(IN)))
    bound = 1.0 / float(IN ** 0.5)
    w = jax.random.uniform(k_w, (OUT, IN), jnp.float32, -bound, bound)  # PyTorch layout
    b = jax.random.uniform(k_b, (OUT,), jnp.float32, -bound, bound)

    # Transpose/reshape the parameters once; reuse across every forward call.
    w_t, b_row = prepare_params(w, b)

    forward = jax.jit(linear_pallas)

    # Primary check at the module's natural tiny size (single-tile path).
    x = jax.random.normal(k_x, (8, IN), jnp.float32)
    y = jax.block_until_ready(forward(x, w_t, b_row))
    y_ref = x @ w.T + b
    assert y.shape == (8, OUT)
    assert jnp.allclose(y, y_ref, atol=1e-5, rtol=1e-5), "mismatch vs reference (B=8)"

    # Secondary check exercising the multi-step grid + partial last block.
    x2 = jax.random.normal(k_x2, (100, IN), jnp.float32)
    y2 = jax.block_until_ready(forward(x2, w_t, b_row))
    y2_ref = x2 @ w.T + b
    assert y2.shape == (100, OUT)
    assert jnp.allclose(y2, y2_ref, atol=1e-5, rtol=1e-5), "mismatch vs reference (B=100)"

    print("KERNEL_OK")
</pallas_src>

<mosaic_0001>
module attributes {stable_mosaic.version = 11 : i64} {
  func.func @linear_kernel(%arg0: i32, %arg1: memref<8x10xf32, #tpu.memory_space<vmem>>, %arg2: memref<10x5xf32, #tpu.memory_space<vmem>>, %arg3: memref<1x5xf32, #tpu.memory_space<vmem>>, %arg4: memref<8x5xf32, #tpu.memory_space<vmem>>) attributes {dimension_semantics = [#tpu.dimension_semantics<parallel>], iteration_bounds = array<i64: 1>, scalar_prefetch = 0 : i64, scratch_operands = 0 : i64, tpu.core_type = #tpu.core_type<tc>, window_params = [{transform_indices = @transform_0, window_bounds = array<i64: 8, 10>}, {pipeline_mode = #tpu.pipeline_mode<synchronous>, transform_indices = @transform_1, window_bounds = array<i64: 10, 5>}, {pipeline_mode = #tpu.pipeline_mode<synchronous>, transform_indices = @transform_2, window_bounds = array<i64: 1, 5>}, {transform_indices = @transform_3, window_bounds = array<i64: 8, 5>}]} {
    %c0 = arith.constant 0 : index
    %c0_0 = arith.constant 0 : index
    %0 = vector.load %arg1[%c0, %c0_0] : memref<8x10xf32, #tpu.memory_space<vmem>>, vector<8x10xf32>
    %c0_1 = arith.constant 0 : index
    %c0_2 = arith.constant 0 : index
    %1 = vector.load %arg2[%c0_1, %c0_2] : memref<10x5xf32, #tpu.memory_space<vmem>>, vector<10x5xf32>
    %cst = arith.constant dense<0.000000e+00> : vector<8x5xf32>
    %2 = tpu.matmul %0, %1, %cst {dimension_numbers = #tpu.dot_dimension_numbers<[1], [0], [0], [1], [0, 0, 1, 1], [], []>} : vector<8x10xf32>, vector<10x5xf32>, vector<8x5xf32> -> vector<8x5xf32>
    %c0_3 = arith.constant 0 : index
    %c0_4 = arith.constant 0 : index
    %3 = vector.load %arg3[%c0_3, %c0_4] : memref<1x5xf32, #tpu.memory_space<vmem>>, vector<1x5xf32>
    %4 = vector.broadcast %3 : vector<1x5xf32> to vector<8x5xf32>
    %5 = arith.addf %2, %4 : vector<8x5xf32>
    %c0_5 = arith.constant 0 : index
    %c0_6 = arith.constant 0 : index
    %6 = vector.load %arg4[%c0_5, %c0_6] : memref<8x5xf32, #tpu.memory_space<vmem>>, vector<8x5xf32>
    tpu.vector_store %arg4[%c0_5, %c0_6], %5 {strides = array<i32>} : memref<8x5xf32, #tpu.memory_space<vmem>>, vector<8x5xf32>,
    return
  }
  func.func @transform_0(%arg0: i32) -> (i32, i32) {
    %c0_i32 = arith.constant 0 : i32
    %c0_i32_0 = arith.constant 0 : i32
    return %arg0, %c0_i32 : i32, i32
  }
  func.func @transform_1(%arg0: i32) -> (i32, i32) {
    %c0_i32 = arith.constant 0 : i32
    %c0_i32_0 = arith.constant 0 : i32
    %c0_i32_1 = arith.constant 0 : i32
    return %c0_i32, %c0_i32_0 : i32, i32
  }
  func.func @transform_2(%arg0: i32) -> (i32, i32) {
    %c0_i32 = arith.constant 0 : i32
    %c0_i32_0 = arith.constant 0 : i32
    %c0_i32_1 = arith.constant 0 : i32
    return %c0_i32, %c0_i32_0 : i32, i32
  }
  func.func @transform_3(%arg0: i32) -> (i32, i32) {
    %c0_i32 = arith.constant 0 : i32
    %c0_i32_0 = arith.constant 0 : i32
    return %arg0, %c0_i32 : i32, i32
  }
}

</mosaic_0001>

<llo_original>
// kernel: linear_pallas.1
$region0: #{linear_pallas.1}
  #allocation0 [shape = 'u32[]', space=smem, size = 0x4, offset = 0x4, fixed_abs, tag = 'smem constant byte address 0x4 - core index']
  #allocation1 [shape = 'u32[144,128]{1,0:T(1,128)}', space=vmem, size = 0x12000, scoped, tag = 'internal scratch']
  %s0 = inlined_call_operand.vmem [shape: f32[8,10], index: 0, kind: input, shape index: {}]
  %s1 = inlined_call_operand.vmem [shape: f32[10,5], index: 1, kind: input, shape index: {}]
  %s2 = inlined_call_operand.vmem [shape: f32[1,5], index: 2, kind: input, shape index: {}]
  %s3 = inlined_call_operand.hbm [shape: f32[8,5], index: 3, kind: output, shape index: {}]
  %s4 = sld [smem:[#allocation0]]
  $region22: #{linear_pallas.1} parent=0
    _
  %s6 = ssub.s32 1, %s4
  %s7 = scalar_select 0, %s6, %s4
  $region1: #{linear_pallas.1} parent=0
    #allocation2 [shape = 'u8[4096]{0}', space=vmem, size = 0x1000, scoped, tag = 'output window, operand 0, single buffered']
    #allocation3 [shape = 's32[1]{0}', space=sflag, size = 0x4, scoped, tag = 'scoped memory for linear_pallas.1']
    %8 = vsyncpa [#allocation3], 0
    // Predicated region
    $region2: #{linear_pallas.1} parent=1 // pred_check
      _
    $region3: #{linear_pallas.1} parent=1 // pred_check_branch
      %10 = sbr.rel (0) target = $region5
    $region4: #{linear_pallas.1} parent=1 // pred_region
      _
    $region5: #{linear_pallas.1} parent=1 // pred_fallthru
      _
    // Predicated region
    $region6: #{linear_pallas.1} parent=1 // pred_check
      _
    $region7: #{linear_pallas.1} parent=1 // pred_check_branch
      %12 = sbr.rel (0) target = $region9
    $region8: #{linear_pallas.1} parent=1 // pred_region
      _
    $region9: #{linear_pallas.1} parent=1 // pred_fallthru
      _
    // Predicated region
    $region10: #{linear_pallas.1} parent=1 // pred_check
      _
    $region11: #{linear_pallas.1} parent=1 // pred_check_branch
      %14 = sbr.rel (0) target = $region13
    $region12: #{linear_pallas.1} parent=1 // pred_region
      _
    $region13: #{linear_pallas.1} parent=1 // pred_fallthru
      _
    %v15 = vld [vmem:[%s0] sm:$0xff]
    %v16 = vld [vmem:[%s1] sm:$0xff]
    %v17 = vld [vmem:[%s1 + $0x8] sm:$0x3]
    %v18 = vld [vmem:[%s2] sm:$0x1]
    %v20 = vlaneseq
    %v21 = vshrl.u32 %v20, 7
    %v22 = vsub.s32 0, %v21
    %v23 = vrot.slane %v18, %v22
    %vm25 = vcmask 80896
    %v27 = vsel %vm25, %v15, 0
    %vm29 = vcmask 1041408
    %v31 = vsel %vm29, %v17, 0
    %33 = vmatprep.subr.mxu0 0.0
    %34 = vmatpush1.msra.mxu0 0.0
    %35 = vmatprep.subr.mxu0 0.0
    %36 = vmatpush1.msra.mxu0 0.0
    %37 = vmatprep.subr.mxu0 0.0
    %38 = vmatpush1.msra.mxu0 0.0
    %39 = vmatprep.subr.mxu0 0.0
    %40 = vmatpush1.msra.mxu0 0.0
    %41 = vmatprep.subr.mxu0 0.0
    %42 = vmatpush1.msra.mxu0 0.0
    %43 = vmatprep.subr.mxu0 0.0
    %44 = vmatpush1.msra.mxu0 0.0
    %45 = vmatprep.subr.mxu0 0.0
    %46 = vmatpush1.msra.mxu0 0.0
    %47 = vmatprep.subr.mxu0 0.0
    %48 = vmatpush1.msra.mxu0 0.0
    %49 = vmatprep.subr.mxu0 0.0
    %50 = vmatpush1.msra.mxu0 0.0
    %51 = vmatprep.subr.mxu0 0.0
    %52 = vmatpush1.msra.mxu0 0.0
    %53 = vmatprep.subr.mxu0 0.0
    %54 = vmatpush1.msra.mxu0 0.0
    %55 = vmatprep.subr.mxu0 0.0
    %56 = vmatpush1.msra.mxu0 0.0
    %57 = vmatprep.subr.mxu0 0.0
    %58 = vmatpush1.msra.mxu0 0.0
    %59 = vmatprep.subr.mxu0 0.0
    %60 = vmatpush1.msra.mxu0 0.0
    %61 = vmatprep.subr.mxu0 0.0
    %62 = vmatpush1.msra.mxu0 %v31
    %63 = vmatprep.subr.mxu0 0.0
    %64 = vmatpush1.msra.mxu0 %v16
    %65 = vmatprep.subr.mxu0 0.0
    %66 = vmatpush2.msra.mxu0 0.0
    %67 = vmatprep.subr.mxu0 0.0
    %68 = vmatpush2.msra.mxu0 0.0
    %69 = vmatprep.subr.mxu0 0.0
    %70 = vmatpush2.msra.mxu0 0.0
    %71 = vmatprep.subr.mxu0 0.0
    %72 = vmatpush2.msra.mxu0 0.0
    %73 = vmatprep.subr.mxu0 0.0
    %74 = vmatpush2.msra.mxu0 0.0
    %75 = vmatprep.subr.mxu0 0.0
    %76 = vmatpush2.msra.mxu0 0.0
    %77 = vmatprep.subr.mxu0 0.0
    %78 = vmatpush2.msra.mxu0 0.0
    %79 = vmatprep.subr.mxu0 0.0
    %80 = vmatpush2.msra.mxu0 0.0
    %81 = vmatprep.subr.mxu0 0.0
    %82 = vmatpush2.msra.mxu0 0.0
    %83 = vmatprep.subr.mxu0 0.0
    %84 = vmatpush2.msra.mxu0 0.0
    %85 = vmatprep.subr.mxu0 0.0
    %86 = vmatpush2.msra.mxu0 0.0
    %87 = vmatprep.subr.mxu0 0.0
    %88 = vmatpush2.msra.mxu0 0.0
    %89 = vmatprep.subr.mxu0 0.0
    %90 = vmatpush2.msra.mxu0 0.0
    %91 = vmatprep.subr.mxu0 0.0
    %92 = vmatpush2.msra.mxu0 0.0
    %93 = vmatprep.subr.mxu0 0.0
    %94 = vmatpush2.msra.mxu0 0.0
    %95 = vmatprep.subr.mxu0 0.0
    %96 = vmatpush2.msra.mxu0 0.0
    %97 = vmatprep.mubr.f32.mxu0 0.0
    %98 = vmatmul.mubr.f32.gmra.mxu0 %v27
    %v99 = vpop.f32.mrf.mxu0
    %v100 = vadd.f32 %v23, %v99
    %v101 = vpop.f32.mrf.mxu0
    %102 = vdwg.mxu0
    %vm103 = vcmask 39936
    %104 = vst.msk [vmem:[#allocation2] sm:$0xff] %vm103, %v100
    // Predicated region
    $region14: #{linear_pallas.1} parent=1 // pred_check
      _
    $region15: #{linear_pallas.1} parent=1 // pred_check_branch
      %106 = sbr.rel (0) target = $region17
    $region16: #{linear_pallas.1} parent=1 // pred_region
      %s108 = ssub.s32 128, 128
      %109 = vsyncadd [#allocation3], %s108
      %s111 = sshll.u32 [#allocation2], 4
      %s112 = int_to_ptr.vmem [resolvable:$true] %s111
      %114 = dma.vmem_to_hbm [thread:$0]  %s112, 128, %s3, [#allocation3]
    $region17: #{linear_pallas.1} parent=1 // pred_fallthru
      _
    // Predicated region
    $region18: #{linear_pallas.1} parent=1 // pred_check
      _
    $region19: #{linear_pallas.1} parent=1 // pred_check_branch
      %116 = sbr.rel (0) target = $region21
    $region20: #{linear_pallas.1} parent=1 // pred_region
      %117 = dma.done [#allocation3], 128
    $region21: #{linear_pallas.1} parent=1 // pred_fallthru
      _
    %118 = vsyncpa [#allocation3], 1

</llo_original>
